<compile_context>
chip_gen: v5e
topology: v5e:2x2
jax: 0.10.0
libtpu: 0.0.40
codegen_flags: <defaults>
</compile_context>

<pallas_src>
import functools

import numpy as np
import jax
import jax.numpy as jnp
from jax.experimental import pallas as pl
from jax.experimental.pallas import tpu as pltpu


# ----------------------------------------------------------------------------
# Kernel: one (tm, ngp) output tile per grid step.
#   out = exp(coeff * (dist[:, None] - offset[None, :])**2)
# ----------------------------------------------------------------------------
def _gaussian_smearing_kernel(dist_ref, offset_ref, out_ref, *, coeff):
    d = dist_ref[...]                                    # (tm, 1)   f32
    y = jnp.exp(coeff * (d - offset_ref[...]) ** 2)      # f32 EUP exp
    out_ref[...] = y.astype(out_ref.dtype)               # cast only at store


def gaussian_smearing(dist, start=0.0, stop=5.0, num_gaussians=50, *,
                      tile_m=1024, out_dtype=jnp.float32):
    """Pallas-TPU GaussianSmearing.forward().

    Torch semantics:
        offset = linspace(start, stop, num_gaussians)
        coeff  = -0.5 / (offset[1] - offset[0])**2
        out    = exp(coeff * (dist.view(-1, 1) - offset.view(1, -1))**2)
    """
    # coeff from Python scalars: identical value, and jit-safe (no tracer leak).
    delta = (float(stop) - float(start)) / (num_gaussians - 1)
    coeff = -0.5 / delta ** 2

    d = jnp.reshape(dist, (-1, 1)).astype(jnp.float32)
    m = d.shape[0]

    ngp = pl.cdiv(num_gaussians, 128) * 128              # lane-dense width
    out_bytes = np.dtype(out_dtype).itemsize

    # Tile choice: large enough to amortize the ~0.35 us per-step overhead,
    # capped so (a) the double-buffered output tile stays <= ~8 MiB of VMEM and
    # (b) the grid keeps >= 2 steps when the input allows (v7x: 2 TensorCores).
    tm = int(tile_m)
    tm = min(tm, max(8, (8 * 1024 * 1024) // (2 * ngp * out_bytes)))
    tm = min(tm, max(8, pl.next_power_of_2(pl.cdiv(m, 2))))
    tm = max(8, (tm // 8) * 8)                           # sublane multiple

    mp = pl.cdiv(m, tm) * tm
    d_p = jnp.pad(d, ((0, mp - m), (0, 0)))
    offset = jnp.linspace(float(start), float(stop), num_gaussians,
                          dtype=jnp.float32)
    off_p = jnp.zeros((1, ngp), jnp.float32).at[0, :num_gaussians].set(offset)

    out = pl.pallas_call(
        functools.partial(_gaussian_smearing_kernel, coeff=coeff),
        out_shape=jax.ShapeDtypeStruct((mp, ngp), out_dtype),
        grid=(mp // tm,),
        in_specs=[pl.BlockSpec((tm, 1), lambda i: (i, 0)),
                  pl.BlockSpec((1, ngp), lambda i: (0, 0))],
        out_specs=pl.BlockSpec((tm, ngp), lambda i: (i, 0)),
        compiler_params=pltpu.CompilerParams(
            dimension_semantics=("parallel",)),
        cost_estimate=pl.CostEstimate(
            flops=3 * mp * ngp,
            transcendentals=mp * ngp,
            bytes_accessed=4 * mp + 4 * ngp + out_bytes * mp * ngp),
    )(d_p, off_p)
    return out[:m, :num_gaussians]


# ----------------------------------------------------------------------------
if __name__ == "__main__":
    key = jax.random.PRNGKey(0)
    start, stop, num_gaussians = 0.0, 5.0, 50

    # Distance vectors (e.g. edge weights): one multi-tile case, one ragged
    # tiny case to exercise the row padding path.
    k1, k2 = jax.random.split(key)
    dist_a = jax.random.uniform(k1, (1000,), jnp.float32, 0.0, 5.0)
    dist_b = jax.random.uniform(k2, (37,), jnp.float32, 0.0, 5.0)

    # Pure-JAX reference == the torch module's forward.
    offset = jnp.linspace(start, stop, num_gaussians)
    coeff = -0.5 / ((stop - start) / (num_gaussians - 1)) ** 2
    ref = lambda d: jnp.exp(coeff * (d.reshape(-1, 1) - offset.reshape(1, -1)) ** 2)

    # f32 output (exact module semantics).
    out_a = jax.block_until_ready(
        gaussian_smearing(dist_a, start, stop, num_gaussians))
    np.testing.assert_allclose(np.asarray(out_a), np.asarray(ref(dist_a)),
                               rtol=1e-4, atol=1e-6)

    out_b = jax.block_until_ready(
        gaussian_smearing(dist_b, start, stop, num_gaussians))
    np.testing.assert_allclose(np.asarray(out_b), np.asarray(ref(dist_b)),
                               rtol=1e-4, atol=1e-6)

    # bf16-store variant (bandwidth option from the review; compute stays f32).
    out_bf = jax.block_until_ready(
        gaussian_smearing(dist_a, start, stop, num_gaussians,
                          out_dtype=jnp.bfloat16))
    np.testing.assert_allclose(np.asarray(out_bf, dtype=np.float32),
                               np.asarray(ref(dist_a)), rtol=2e-2, atol=2e-2)

    print("KERNEL_OK")
</pallas_src>

<mosaic_0001>
module attributes {stable_mosaic.version = 11 : i64} {
  func.func @_gaussian_smearing_kernel(%arg0: i32, %arg1: memref<512x1xf32, #tpu.memory_space<vmem>>, %arg2: memref<1x128xf32, #tpu.memory_space<vmem>>, %arg3: memref<512x128xf32, #tpu.memory_space<vmem>>) attributes {dimension_semantics = [#tpu.dimension_semantics<parallel>], iteration_bounds = array<i64: 2>, scalar_prefetch = 0 : i64, scratch_operands = 0 : i64, tpu.core_type = #tpu.core_type<tc>, window_params = [{transform_indices = @transform_0, window_bounds = array<i64: 512, 1>}, {pipeline_mode = #tpu.pipeline_mode<synchronous>, transform_indices = @transform_1, window_bounds = array<i64: 1, 128>}, {transform_indices = @transform_2, window_bounds = array<i64: 512, 128>}]} {
    %c0 = arith.constant 0 : index
    %c0_0 = arith.constant 0 : index
    %0 = vector.load %arg1[%c0, %c0_0] : memref<512x1xf32, #tpu.memory_space<vmem>>, vector<512x1xf32>
    %c0_1 = arith.constant 0 : index
    %c0_2 = arith.constant 0 : index
    %1 = vector.load %arg2[%c0_1, %c0_2] : memref<1x128xf32, #tpu.memory_space<vmem>>, vector<1x128xf32>
    %2 = vector.broadcast %0 : vector<512x1xf32> to vector<512x128xf32>
    %3 = vector.broadcast %1 : vector<1x128xf32> to vector<512x128xf32>
    %4 = arith.subf %2, %3 : vector<512x128xf32>
    %5 = arith.mulf %4, %4 : vector<512x128xf32>
    %cst = arith.constant -4.802000e+01 : f32
    %6 = vector.broadcast %cst : f32 to vector<512x128xf32>
    %7 = arith.mulf %6, %5 : vector<512x128xf32>
    %8 = math.exp %7 : vector<512x128xf32>
    %c0_3 = arith.constant 0 : index
    %c0_4 = arith.constant 0 : index
    %9 = vector.load %arg3[%c0_3, %c0_4] : memref<512x128xf32, #tpu.memory_space<vmem>>, vector<512x128xf32>
    tpu.vector_store %arg3[%c0_3, %c0_4], %8 {strides = array<i32>} : memref<512x128xf32, #tpu.memory_space<vmem>>, vector<512x128xf32>,
    return
  }
  func.func @transform_0(%arg0: i32) -> (i32, i32) {
    %c0_i32 = arith.constant 0 : i32
    %c0_i32_0 = arith.constant 0 : i32
    return %arg0, %c0_i32 : i32, i32
  }
  func.func @transform_1(%arg0: i32) -> (i32, i32) {
    %c0_i32 = arith.constant 0 : i32
    %c0_i32_0 = arith.constant 0 : i32
    %c0_i32_1 = arith.constant 0 : i32
    return %c0_i32, %c0_i32_0 : i32, i32
  }
  func.func @transform_2(%arg0: i32) -> (i32, i32) {
    %c0_i32 = arith.constant 0 : i32
    %c0_i32_0 = arith.constant 0 : i32
    return %arg0, %c0_i32 : i32, i32
  }
}

</mosaic_0001>

<llo_original>
// kernel: tpu_custom_call.1
$region0: #{tpu_custom_call.1}
  #allocation0 [shape = 'u32[]', space=smem, size = 0x4, offset = 0x4, fixed_abs, tag = 'smem constant byte address 0x4 - core index']
  #allocation1 [shape = 'u32[72,128]{1,0:T(1,128)}', space=vmem, size = 0x9000, scoped, tag = 'internal scratch']
  %s0 = inlined_call_operand.vmem [shape: f32[1024,1], index: 0, kind: input, shape index: {}]
  %s1 = inlined_call_operand.vmem [shape: f32[1,128], index: 1, kind: input, shape index: {}]
  %s2 = inlined_call_operand.hbm [shape: f32[1024,128], index: 2, kind: output, shape index: {}]
  %s3 = sld [smem:[#allocation0]]
  $region41: #{tpu_custom_call.1} parent=0
    _
  %s5 = ssub.s32 1, %s3
  %s6 = scalar_select 0, %s5, %s3
  $region1: #{tpu_custom_call.1} parent=0
    #allocation2 [shape = 'u8[524288]{0}', space=vmem, size = 0x80000, scoped, tag = 'output window, operand 0']
    #allocation3 [shape = 's32[2]{0}', space=sflag, size = 0x8, scoped, tag = 'scoped memory for tpu_custom_call.1']
    %7 = vsyncpa [#allocation3], 0
    %s8 = scalar_lea.sflag [#allocation3], 1
    %9 = vsyncpa %s8, 0
    loop: start=0, step=1, limit=4
    $region2: #{tpu_custom_call.1} parent=1 // loop_pre_header
      _
    $region3: #{tpu_custom_call.1} parent=1 // loop_header
      %s11 = sphi 0, %s15
      %p12 = scmp.ge.s32.totalorder %s11, 4
      %s21 = sphi 0, %s23
      %s24 = sphi 0, %s21
      %s25 = sphi 0, %s24
      %s41 = sphi 0, %s25
      %s45 = sphi 0, %s45
      %s47 = sphi 0, %s45
      %s48 = sphi 0, %s47
      %s62 = sphi 0, %s48
      %s68 = sphi 0, %s70
      %s71 = sphi 0, %s68
      %s72 = sphi 0, %s71
      %s88 = sphi 0, %s72
    $region4: #{tpu_custom_call.1} parent=1 // loop_header_branch
      %14 = sbr.rel (%p12) target = $region8
    $region5: #{tpu_custom_call.1} parent=1 // loop_body
      %s16 = ssub.s32 %s11, 1
      %s17 = ssub.s32 %s11, 2
      %s18 = sadd.s32 %s11, 1
      %s19 = ssub.s32 %s11, %s18
      %p20 = scmp.eq.s32.totalorder %s19, 0
      %s22 = sadd.s32 %s21, 1
      %s23 = scalar_select %p20, %s21, %s22
      %p26 = pneg %p20
      %p27 = scmp.eq.s32.totalorder %s11, 1
      %p28 = por %p26, %p27
      %p29 = scmp.ne.s32.totalorder %s21, %s24
      %p30 = scmp.eq.s32.totalorder %s11, 0
      %p31 = por %p29, %p30
      %p32 = scmp.ne.s32.totalorder %s21, %s24
      %p33 = scmp.eq.s32.totalorder %s16, 1
      %p34 = por %p32, %p33
      %p35 = scmp.ne.s32.totalorder %s24, %s25
      %p36 = scmp.eq.s32.totalorder %s16, 0
      %p37 = por %p35, %p36
      %p38 = scmp.ne.s32.totalorder %s24, %s25
      %p39 = scmp.eq.s32.totalorder %s17, 1
      %p40 = por %p38, %p39
      %p42 = scmp.ne.s32.totalorder %s25, %s41
      %p43 = scmp.eq.s32.totalorder %s17, 0
      %p44 = por %p42, %p43
      %s46 = sadd.s32 %s45, 1
      %p49 = scmp.eq.s32.totalorder %s11, 1
      %p50 = scmp.ne.s32.totalorder %s45, %s47
      %p51 = scmp.eq.s32.totalorder %s11, 0
      %p52 = por %p50, %p51
      %p53 = scmp.ne.s32.totalorder %s45, %s47
      %p54 = scmp.eq.s32.totalorder %s16, 1
      %p55 = por %p53, %p54
      %p56 = scmp.ne.s32.totalorder %s47, %s48
      %p57 = scmp.eq.s32.totalorder %s16, 0
      %p58 = por %p56, %p57
      %p59 = scmp.ne.s32.totalorder %s47, %s48
      %p60 = scmp.eq.s32.totalorder %s17, 1
      %p61 = por %p59, %p60
      %p63 = scmp.ne.s32.totalorder %s48, %s62
      %p64 = scmp.eq.s32.totalorder %s17, 0
      %p65 = por %p63, %p64
      %s66 = ssub.s32 %s11, %s18
      %p67 = scmp.eq.s32.totalorder %s66, 0
      %s69 = sadd.s32 %s68, 1
      %s70 = scalar_select %p67, %s68, %s69
      %p73 = pneg %p67
      %p74 = scmp.eq.s32.totalorder %s11, 1
      %p75 = por %p73, %p74
      %p76 = scmp.ne.s32.totalorder %s68, %s71
      %p77 = scmp.eq.s32.totalorder %s11, 0
      %p78 = por %p76, %p77
      %p79 = scmp.ne.s32.totalorder %s68, %s71
      %p80 = scmp.eq.s32.totalorder %s16, 1
      %p81 = por %p79, %p80
      %p82 = scmp.ne.s32.totalorder %s71, %s72
      %p83 = scmp.eq.s32.totalorder %s16, 0
      %p84 = por %p82, %p83
      %p85 = scmp.ne.s32.totalorder %s71, %s72
      %p86 = scmp.eq.s32.totalorder %s17, 1
      %p87 = por %p85, %p86
      %p89 = scmp.ne.s32.totalorder %s72, %s88
      %p90 = scmp.eq.s32.totalorder %s17, 0
      %p91 = por %p89, %p90
      %p92 = scmp.le.s32.totalorder 1, %s11
      %p93 = scmp.lt.s32.totalorder %s11, 3
      %p94 = pnand %p92, %p93
      %p95 = pneg %p94
      // Predicated region
      $region9: #{tpu_custom_call.1} parent=5 // pred_check
        _
      $region10: #{tpu_custom_call.1} parent=5 // pred_check_branch
        %97 = sbr.rel (%p94) target = $region12
      $region11: #{tpu_custom_call.1} parent=5 // pred_region
        %s98 = ssub.s32 %s11, 1
        // Predicated region
        $region13: #{tpu_custom_call.1} parent=11 // pred_check
          %p99 = pneg %p58
        $region14: #{tpu_custom_call.1} parent=11 // pred_check_branch
          %101 = sbr.rel (%p99) target = $region16
        $region15: #{tpu_custom_call.1} parent=11 // pred_region
          _
        $region16: #{tpu_custom_call.1} parent=11 // pred_fallthru
          _
      $region12: #{tpu_custom_call.1} parent=5 // pred_fallthru
        _
      %p102 = scmp.lt.s32.totalorder %s11, 2
      // Predicated region
      $region17: #{tpu_custom_call.1} parent=5 // pred_check
        %p103 = pneg %p102
      $region18: #{tpu_custom_call.1} parent=5 // pred_check_branch
        %105 = sbr.rel (%p103) target = $region20
      $region19: #{tpu_custom_call.1} parent=5 // pred_region
        // Predicated region
        $region21: #{tpu_custom_call.1} parent=19 // pred_check
          %p106 = pneg %p31
        $region22: #{tpu_custom_call.1} parent=19 // pred_check_branch
          %108 = sbr.rel (%p106) target = $region24
        $region23: #{tpu_custom_call.1} parent=19 // pred_region
          %s109 = smul.u32 64, %s11
          %p110 = scmp.lt.s32.totalorder %s109, 127
          %s111 = scalar_select %p110, %s109, 127
          %s112 = smul.addr %s111, 8
          %s113 = scalar_lea.vmem %s0, %s112
          %s114 = smul.u32 64, %s11
        $region24: #{tpu_custom_call.1} parent=19 // pred_fallthru
          _
      $region20: #{tpu_custom_call.1} parent=5 // pred_fallthru
        _
      %p115 = scmp.le.s32.totalorder 1, %s11
      %p116 = scmp.lt.s32.totalorder %s11, 3
      %p117 = pnand %p115, %p116
      %p118 = pneg %p117
      // Predicated region
      $region25: #{tpu_custom_call.1} parent=5 // pred_check
        _
      $region26: #{tpu_custom_call.1} parent=5 // pred_check_branch
        %120 = sbr.rel (%p117) target = $region28
      $region27: #{tpu_custom_call.1} parent=5 // pred_region
        %s121 = ssub.s32 %s11, 1
        %s122 = smul.u32 64, %s16
        %p123 = scmp.lt.s32.totalorder %s122, 127
        %s124 = scalar_select %p123, %s122, 127
        %s125 = smul.addr %s124, 8
        %s126 = scalar_lea.vmem %s0, %s125
        %p127 = pneg %p37
        %p128 = pneg %p34
        %p129 = pneg %p58
        %p130 = pneg %p55
        %p131 = pneg %p84
        %p132 = pneg %p81
        %s133 = sand.u32 %s71, 1
        %s134 = scalar_lea.sflag [#allocation3], %s133
        %s135 = sand.u32 %s71, 1
        %s136 = smul.addr %s135, 512
        %s137 = scalar_lea.vmem [#allocation2], %s136
        %s138 = smul.u32 64, %s16
        %p139 = scmp.lt.s32.totalorder %s138, 127
        %s140 = scalar_select %p139, %s138, 127
        %s141 = smul.addr %s140, 8
        %s142 = scalar_lea.vmem %s0, %s141
        %s143 = smul.u32 64, %s16
        %s144 = smul.u32 64, %s16
        %v145 = vld [vmem:[%s142] sm:$0xff]
        %v146 = vld [vmem:[%s142 + $0x8] sm:$0xff]
        %v147 = vld [vmem:[%s142 + $0x10] sm:$0xff]
        %v148 = vld [vmem:[%s142 + $0x18] sm:$0xff]
        %v149 = vld [vmem:[%s142 + $0x20] sm:$0xff]
        %v150 = vld [vmem:[%s142 + $0x28] sm:$0xff]
        %v151 = vld [vmem:[%s142 + $0x30] sm:$0xff]
        %v152 = vld [vmem:[%s142 + $0x38] sm:$0xff]
        %v153 = vld [vmem:[%s142 + $0x40] sm:$0xff]
        %v154 = vld [vmem:[%s142 + $0x48] sm:$0xff]
        %v155 = vld [vmem:[%s142 + $0x50] sm:$0xff]
        %v156 = vld [vmem:[%s142 + $0x58] sm:$0xff]
        %v157 = vld [vmem:[%s142 + $0x60] sm:$0xff]
        %v158 = vld [vmem:[%s142 + $0x68] sm:$0xff]
        %v159 = vld [vmem:[%s142 + $0x70] sm:$0xff]
        %v160 = vld [vmem:[%s142 + $0x78] sm:$0xff]
        %v161 = vld [vmem:[%s142 + $0x80] sm:$0xff]
        %v162 = vld [vmem:[%s142 + $0x88] sm:$0xff]
        %v163 = vld [vmem:[%s142 + $0x90] sm:$0xff]
        %v164 = vld [vmem:[%s142 + $0x98] sm:$0xff]
        %v165 = vld [vmem:[%s142 + $0xa0] sm:$0xff]
        %v166 = vld [vmem:[%s142 + $0xa8] sm:$0xff]
        %v167 = vld [vmem:[%s142 + $0xb0] sm:$0xff]
        %v168 = vld [vmem:[%s142 + $0xb8] sm:$0xff]
        %v169 = vld [vmem:[%s142 + $0xc0] sm:$0xff]
        %v170 = vld [vmem:[%s142 + $0xc8] sm:$0xff]
        %v171 = vld [vmem:[%s142 + $0xd0] sm:$0xff]
        %v172 = vld [vmem:[%s142 + $0xd8] sm:$0xff]
        %v173 = vld [vmem:[%s142 + $0xe0] sm:$0xff]
        %v174 = vld [vmem:[%s142 + $0xe8] sm:$0xff]
        %v175 = vld [vmem:[%s142 + $0xf0] sm:$0xff]
        %v176 = vld [vmem:[%s142 + $0xf8] sm:$0xff]
        %v177 = vld [vmem:[%s142 + $0x100] sm:$0xff]
        %v178 = vld [vmem:[%s142 + $0x108] sm:$0xff]
        %v179 = vld [vmem:[%s142 + $0x110] sm:$0xff]
        %v180 = vld [vmem:[%s142 + $0x118] sm:$0xff]
        %v181 = vld [vmem:[%s142 + $0x120] sm:$0xff]
        %v182 = vld [vmem:[%s142 + $0x128] sm:$0xff]
        %v183 = vld [vmem:[%s142 + $0x130] sm:$0xff]
        %v184 = vld [vmem:[%s142 + $0x138] sm:$0xff]
        %v185 = vld [vmem:[%s142 + $0x140] sm:$0xff]
        %v186 = vld [vmem:[%s142 + $0x148] sm:$0xff]
        %v187 = vld [vmem:[%s142 + $0x150] sm:$0xff]
        %v188 = vld [vmem:[%s142 + $0x158] sm:$0xff]
        %v189 = vld [vmem:[%s142 + $0x160] sm:$0xff]
        %v190 = vld [vmem:[%s142 + $0x168] sm:$0xff]
        %v191 = vld [vmem:[%s142 + $0x170] sm:$0xff]
        %v192 = vld [vmem:[%s142 + $0x178] sm:$0xff]
        %v193 = vld [vmem:[%s142 + $0x180] sm:$0xff]
        %v194 = vld [vmem:[%s142 + $0x188] sm:$0xff]
        %v195 = vld [vmem:[%s142 + $0x190] sm:$0xff]
        %v196 = vld [vmem:[%s142 + $0x198] sm:$0xff]
        %v197 = vld [vmem:[%s142 + $0x1a0] sm:$0xff]
        %v198 = vld [vmem:[%s142 + $0x1a8] sm:$0xff]
        %v199 = vld [vmem:[%s142 + $0x1b0] sm:$0xff]
        %v200 = vld [vmem:[%s142 + $0x1b8] sm:$0xff]
        %v201 = vld [vmem:[%s142 + $0x1c0] sm:$0xff]
        %v202 = vld [vmem:[%s142 + $0x1c8] sm:$0xff]
        %v203 = vld [vmem:[%s142 + $0x1d0] sm:$0xff]
        %v204 = vld [vmem:[%s142 + $0x1d8] sm:$0xff]
        %v205 = vld [vmem:[%s142 + $0x1e0] sm:$0xff]
        %v206 = vld [vmem:[%s142 + $0x1e8] sm:$0xff]
        %v207 = vld [vmem:[%s142 + $0x1f0] sm:$0xff]
        %v208 = vld [vmem:[%s142 + $0x1f8] sm:$0xff]
        %v209 = vld [vmem:[%s1] sm:$0x1]
        %211 = vset.pattern.permute.xlu0 0
        %212 = vperm.xlu0 %211, %v145
        %v213 = vpop.permute.xlu0 %212
        %216 = vset.pattern.permute.xlu0 0
        %217 = vperm.xlu0 %216, %v146
        %v218 = vpop.permute.xlu0 %217
        %221 = vset.pattern.permute.xlu0 0
        %222 = vperm.xlu0 %221, %v147
        %v223 = vpop.permute.xlu0 %222
        %226 = vset.pattern.permute.xlu0 0
        %227 = vperm.xlu0 %226, %v148
        %v228 = vpop.permute.xlu0 %227
        %231 = vset.pattern.permute.xlu0 0
        %232 = vperm.xlu0 %231, %v149
        %v233 = vpop.permute.xlu0 %232
        %236 = vset.pattern.permute.xlu0 0
        %237 = vperm.xlu0 %236, %v150
        %v238 = vpop.permute.xlu0 %237
        %241 = vset.pattern.permute.xlu0 0
        %242 = vperm.xlu0 %241, %v151
        %v243 = vpop.permute.xlu0 %242
        %246 = vset.pattern.permute.xlu0 0
        %247 = vperm.xlu0 %246, %v152
        %v248 = vpop.permute.xlu0 %247
        %251 = vset.pattern.permute.xlu0 0
        %252 = vperm.xlu0 %251, %v153
        %v253 = vpop.permute.xlu0 %252
        %256 = vset.pattern.permute.xlu0 0
        %257 = vperm.xlu0 %256, %v154
        %v258 = vpop.permute.xlu0 %257
        %261 = vset.pattern.permute.xlu0 0
        %262 = vperm.xlu0 %261, %v155
        %v263 = vpop.permute.xlu0 %262
        %266 = vset.pattern.permute.xlu0 0
        %267 = vperm.xlu0 %266, %v156
        %v268 = vpop.permute.xlu0 %267
        %271 = vset.pattern.permute.xlu0 0
        %272 = vperm.xlu0 %271, %v157
        %v273 = vpop.permute.xlu0 %272
        %276 = vset.pattern.permute.xlu0 0
        %277 = vperm.xlu0 %276, %v158
        %v278 = vpop.permute.xlu0 %277
        %281 = vset.pattern.permute.xlu0 0
        %282 = vperm.xlu0 %281, %v159
        %v283 = vpop.permute.xlu0 %282
        %286 = vset.pattern.permute.xlu0 0
        %287 = vperm.xlu0 %286, %v160
        %v288 = vpop.permute.xlu0 %287
        %291 = vset.pattern.permute.xlu0 0
        %292 = vperm.xlu0 %291, %v161
        %v293 = vpop.permute.xlu0 %292
        %296 = vset.pattern.permute.xlu0 0
        %297 = vperm.xlu0 %296, %v162
        %v298 = vpop.permute.xlu0 %297
        %301 = vset.pattern.permute.xlu0 0
        %302 = vperm.xlu0 %301, %v163
        %v303 = vpop.permute.xlu0 %302
        %306 = vset.pattern.permute.xlu0 0
        %307 = vperm.xlu0 %306, %v164
        %v308 = vpop.permute.xlu0 %307
        %311 = vset.pattern.permute.xlu0 0
        %312 = vperm.xlu0 %311, %v165
        %v313 = vpop.permute.xlu0 %312
        %316 = vset.pattern.permute.xlu0 0
        %317 = vperm.xlu0 %316, %v166
        %v318 = vpop.permute.xlu0 %317
        %321 = vset.pattern.permute.xlu0 0
        %322 = vperm.xlu0 %321, %v167
        %v323 = vpop.permute.xlu0 %322
        %326 = vset.pattern.permute.xlu0 0
        %327 = vperm.xlu0 %326, %v168
        %v328 = vpop.permute.xlu0 %327
        %331 = vset.pattern.permute.xlu0 0
        %332 = vperm.xlu0 %331, %v169
        %v333 = vpop.permute.xlu0 %332
        %336 = vset.pattern.permute.xlu0 0
        %337 = vperm.xlu0 %336, %v170
        %v338 = vpop.permute.xlu0 %337
        %341 = vset.pattern.permute.xlu0 0
        %342 = vperm.xlu0 %341, %v171
        %v343 = vpop.permute.xlu0 %342
        %346 = vset.pattern.permute.xlu0 0
        %347 = vperm.xlu0 %346, %v172
        %v348 = vpop.permute.xlu0 %347
        %351 = vset.pattern.permute.xlu0 0
        %352 = vperm.xlu0 %351, %v173
        %v353 = vpop.permute.xlu0 %352
        %356 = vset.pattern.permute.xlu0 0
        %357 = vperm.xlu0 %356, %v174
        %v358 = vpop.permute.xlu0 %357
        %361 = vset.pattern.permute.xlu0 0
        %362 = vperm.xlu0 %361, %v175
        %v363 = vpop.permute.xlu0 %362
        %366 = vset.pattern.permute.xlu0 0
        %367 = vperm.xlu0 %366, %v176
        %v368 = vpop.permute.xlu0 %367
        %371 = vset.pattern.permute.xlu0 0
        %372 = vperm.xlu0 %371, %v177
        %v373 = vpop.permute.xlu0 %372
        %376 = vset.pattern.permute.xlu0 0
        %377 = vperm.xlu0 %376, %v178
        %v378 = vpop.permute.xlu0 %377
        %381 = vset.pattern.permute.xlu0 0
        %382 = vperm.xlu0 %381, %v179
        %v383 = vpop.permute.xlu0 %382
        %386 = vset.pattern.permute.xlu0 0
        %387 = vperm.xlu0 %386, %v180
        %v388 = vpop.permute.xlu0 %387
        %391 = vset.pattern.permute.xlu0 0
        %392 = vperm.xlu0 %391, %v181
        %v393 = vpop.permute.xlu0 %392
        %396 = vset.pattern.permute.xlu0 0
        %397 = vperm.xlu0 %396, %v182
        %v398 = vpop.permute.xlu0 %397
        %401 = vset.pattern.permute.xlu0 0
        %402 = vperm.xlu0 %401, %v183
        %v403 = vpop.permute.xlu0 %402
        %406 = vset.pattern.permute.xlu0 0
        %407 = vperm.xlu0 %406, %v184
        %v408 = vpop.permute.xlu0 %407
        %411 = vset.pattern.permute.xlu0 0
        %412 = vperm.xlu0 %411, %v185
        %v413 = vpop.permute.xlu0 %412
        %416 = vset.pattern.permute.xlu0 0
        %417 = vperm.xlu0 %416, %v186
        %v418 = vpop.permute.xlu0 %417
        %421 = vset.pattern.permute.xlu0 0
        %422 = vperm.xlu0 %421, %v187
        %v423 = vpop.permute.xlu0 %422
        %426 = vset.pattern.permute.xlu0 0
        %427 = vperm.xlu0 %426, %v188
        %v428 = vpop.permute.xlu0 %427
        %431 = vset.pattern.permute.xlu0 0
        %432 = vperm.xlu0 %431, %v189
        %v433 = vpop.permute.xlu0 %432
        %436 = vset.pattern.permute.xlu0 0
        %437 = vperm.xlu0 %436, %v190
        %v438 = vpop.permute.xlu0 %437
        %441 = vset.pattern.permute.xlu0 0
        %442 = vperm.xlu0 %441, %v191
        %v443 = vpop.permute.xlu0 %442
        %446 = vset.pattern.permute.xlu0 0
        %447 = vperm.xlu0 %446, %v192
        %v448 = vpop.permute.xlu0 %447
        %451 = vset.pattern.permute.xlu0 0
        %452 = vperm.xlu0 %451, %v193
        %v453 = vpop.permute.xlu0 %452
        %456 = vset.pattern.permute.xlu0 0
        %457 = vperm.xlu0 %456, %v194
        %v458 = vpop.permute.xlu0 %457
        %461 = vset.pattern.permute.xlu0 0
        %462 = vperm.xlu0 %461, %v195
        %v463 = vpop.permute.xlu0 %462
        %466 = vset.pattern.permute.xlu0 0
        %467 = vperm.xlu0 %466, %v196
        %v468 = vpop.permute.xlu0 %467
        %471 = vset.pattern.permute.xlu0 0
        %472 = vperm.xlu0 %471, %v197
        %v473 = vpop.permute.xlu0 %472
        %476 = vset.pattern.permute.xlu0 0
        %477 = vperm.xlu0 %476, %v198
        %v478 = vpop.permute.xlu0 %477
        %481 = vset.pattern.permute.xlu0 0
        %482 = vperm.xlu0 %481, %v199
        %v483 = vpop.permute.xlu0 %482
        %486 = vset.pattern.permute.xlu0 0
        %487 = vperm.xlu0 %486, %v200
        %v488 = vpop.permute.xlu0 %487
        %491 = vset.pattern.permute.xlu0 0
        %492 = vperm.xlu0 %491, %v201
        %v493 = vpop.permute.xlu0 %492
        %496 = vset.pattern.permute.xlu0 0
        %497 = vperm.xlu0 %496, %v202
        %v498 = vpop.permute.xlu0 %497
        %501 = vset.pattern.permute.xlu0 0
        %502 = vperm.xlu0 %501, %v203
        %v503 = vpop.permute.xlu0 %502
        %506 = vset.pattern.permute.xlu0 0
        %507 = vperm.xlu0 %506, %v204
        %v508 = vpop.permute.xlu0 %507
        %511 = vset.pattern.permute.xlu0 0
        %512 = vperm.xlu0 %511, %v205
        %v513 = vpop.permute.xlu0 %512
        %516 = vset.pattern.permute.xlu0 0
        %517 = vperm.xlu0 %516, %v206
        %v518 = vpop.permute.xlu0 %517
        %521 = vset.pattern.permute.xlu0 0
        %522 = vperm.xlu0 %521, %v207
        %v523 = vpop.permute.xlu0 %522
        %526 = vset.pattern.permute.xlu0 0
        %527 = vperm.xlu0 %526, %v208
        %v528 = vpop.permute.xlu0 %527
        %v531 = vperm.slane %v209, 0
        %v533 = vsub.f32 %v213, %v531
        %v534 = vsub.f32 %v218, %v531
        %v535 = vsub.f32 %v223, %v531
        %v536 = vsub.f32 %v228, %v531
        %v537 = vsub.f32 %v233, %v531
        %v538 = vsub.f32 %v238, %v531
        %v539 = vsub.f32 %v243, %v531
        %v540 = vsub.f32 %v248, %v531
        %v541 = vsub.f32 %v253, %v531
        %v542 = vsub.f32 %v258, %v531
        %v543 = vsub.f32 %v263, %v531
        %v544 = vsub.f32 %v268, %v531
        %v545 = vsub.f32 %v273, %v531
        %v546 = vsub.f32 %v278, %v531
        %v547 = vsub.f32 %v283, %v531
        %v548 = vsub.f32 %v288, %v531
        %v549 = vsub.f32 %v293, %v531
        %v550 = vsub.f32 %v298, %v531
        %v551 = vsub.f32 %v303, %v531
        %v552 = vsub.f32 %v308, %v531
        %v553 = vsub.f32 %v313, %v531
        %v554 = vsub.f32 %v318, %v531
        %v555 = vsub.f32 %v323, %v531
        %v556 = vsub.f32 %v328, %v531
        %v557 = vsub.f32 %v333, %v531
        %v558 = vsub.f32 %v338, %v531
        %v559 = vsub.f32 %v343, %v531
        %v560 = vsub.f32 %v348, %v531
        %v561 = vsub.f32 %v353, %v531
        %v562 = vsub.f32 %v358, %v531
        %v563 = vsub.f32 %v363, %v531
        %v564 = vsub.f32 %v368, %v531
        %v565 = vsub.f32 %v373, %v531
        %v566 = vsub.f32 %v378, %v531
        %v567 = vsub.f32 %v383, %v531
        %v568 = vsub.f32 %v388, %v531
        %v569 = vsub.f32 %v393, %v531
        %v570 = vsub.f32 %v398, %v531
        %v571 = vsub.f32 %v403, %v531
        %v572 = vsub.f32 %v408, %v531
        %v573 = vsub.f32 %v413, %v531
        %v574 = vsub.f32 %v418, %v531
        %v575 = vsub.f32 %v423, %v531
        %v576 = vsub.f32 %v428, %v531
        %v577 = vsub.f32 %v433, %v531
        %v578 = vsub.f32 %v438, %v531
        %v579 = vsub.f32 %v443, %v531
        %v580 = vsub.f32 %v448, %v531
        %v581 = vsub.f32 %v453, %v531
        %v582 = vsub.f32 %v458, %v531
        %v583 = vsub.f32 %v463, %v531
        %v584 = vsub.f32 %v468, %v531
        %v585 = vsub.f32 %v473, %v531
        %v586 = vsub.f32 %v478, %v531
        %v587 = vsub.f32 %v483, %v531
        %v588 = vsub.f32 %v488, %v531
        %v589 = vsub.f32 %v493, %v531
        %v590 = vsub.f32 %v498, %v531
        %v591 = vsub.f32 %v503, %v531
        %v592 = vsub.f32 %v508, %v531
        %v593 = vsub.f32 %v513, %v531
        %v594 = vsub.f32 %v518, %v531
        %v595 = vsub.f32 %v523, %v531
        %v596 = vsub.f32 %v528, %v531
        %v597 = vmul.f32 %v533, %v533
        %v598 = vmul.f32 %v534, %v534
        %v599 = vmul.f32 %v535, %v535
        %v600 = vmul.f32 %v536, %v536
        %v601 = vmul.f32 %v537, %v537
        %v602 = vmul.f32 %v538, %v538
        %v603 = vmul.f32 %v539, %v539
        %v604 = vmul.f32 %v540, %v540
        %v605 = vmul.f32 %v541, %v541
        %v606 = vmul.f32 %v542, %v542
        %v607 = vmul.f32 %v543, %v543
        %v608 = vmul.f32 %v544, %v544
        %v609 = vmul.f32 %v545, %v545
        %v610 = vmul.f32 %v546, %v546
        %v611 = vmul.f32 %v547, %v547
        %v612 = vmul.f32 %v548, %v548
        %v613 = vmul.f32 %v549, %v549
        %v614 = vmul.f32 %v550, %v550
        %v615 = vmul.f32 %v551, %v551
        %v616 = vmul.f32 %v552, %v552
        %v617 = vmul.f32 %v553, %v553
        %v618 = vmul.f32 %v554, %v554
        %v619 = vmul.f32 %v555, %v555
        %v620 = vmul.f32 %v556, %v556
        %v621 = vmul.f32 %v557, %v557
        %v622 = vmul.f32 %v558, %v558
        %v623 = vmul.f32 %v559, %v559
        %v624 = vmul.f32 %v560, %v560
        %v625 = vmul.f32 %v561, %v561
        %v626 = vmul.f32 %v562, %v562
        %v627 = vmul.f32 %v563, %v563
        %v628 = vmul.f32 %v564, %v564
        %v629 = vmul.f32 %v565, %v565
        %v630 = vmul.f32 %v566, %v566
        %v631 = vmul.f32 %v567, %v567
        %v632 = vmul.f32 %v568, %v568
        %v633 = vmul.f32 %v569, %v569
        %v634 = vmul.f32 %v570, %v570
        %v635 = vmul.f32 %v571, %v571
        %v636 = vmul.f32 %v572, %v572
        %v637 = vmul.f32 %v573, %v573
        %v638 = vmul.f32 %v574, %v574
        %v639 = vmul.f32 %v575, %v575
        %v640 = vmul.f32 %v576, %v576
        %v641 = vmul.f32 %v577, %v577
        %v642 = vmul.f32 %v578, %v578
        %v643 = vmul.f32 %v579, %v579
        %v644 = vmul.f32 %v580, %v580
        %v645 = vmul.f32 %v581, %v581
        %v646 = vmul.f32 %v582, %v582
        %v647 = vmul.f32 %v583, %v583
        %v648 = vmul.f32 %v584, %v584
        %v649 = vmul.f32 %v585, %v585
        %v650 = vmul.f32 %v586, %v586
        %v651 = vmul.f32 %v587, %v587
        %v652 = vmul.f32 %v588, %v588
        %v653 = vmul.f32 %v589, %v589
        %v654 = vmul.f32 %v590, %v590
        %v655 = vmul.f32 %v591, %v591
        %v656 = vmul.f32 %v592, %v592
        %v657 = vmul.f32 %v593, %v593
        %v658 = vmul.f32 %v594, %v594
        %v659 = vmul.f32 %v595, %v595
        %v660 = vmul.f32 %v596, %v596
        %v661 = vmul.f32 %v597, -48.02
        %v662 = vmul.f32 %v598, -48.02
        %v663 = vmul.f32 %v599, -48.02
        %v664 = vmul.f32 %v600, -48.02
        %v665 = vmul.f32 %v601, -48.02
        %v666 = vmul.f32 %v602, -48.02
        %v667 = vmul.f32 %v603, -48.02
        %v668 = vmul.f32 %v604, -48.02
        %v669 = vmul.f32 %v605, -48.02
        %v670 = vmul.f32 %v606, -48.02
        %v671 = vmul.f32 %v607, -48.02
        %v672 = vmul.f32 %v608, -48.02
        %v673 = vmul.f32 %v609, -48.02
        %v674 = vmul.f32 %v610, -48.02
        %v675 = vmul.f32 %v611, -48.02
        %v676 = vmul.f32 %v612, -48.02
        %v677 = vmul.f32 %v613, -48.02
        %v678 = vmul.f32 %v614, -48.02
        %v679 = vmul.f32 %v615, -48.02
        %v680 = vmul.f32 %v616, -48.02
        %v681 = vmul.f32 %v617, -48.02
        %v682 = vmul.f32 %v618, -48.02
        %v683 = vmul.f32 %v619, -48.02
        %v684 = vmul.f32 %v620, -48.02
        %v685 = vmul.f32 %v621, -48.02
        %v686 = vmul.f32 %v622, -48.02
        %v687 = vmul.f32 %v623, -48.02
        %v688 = vmul.f32 %v624, -48.02
        %v689 = vmul.f32 %v625, -48.02
        %v690 = vmul.f32 %v626, -48.02
        %v691 = vmul.f32 %v627, -48.02
        %v692 = vmul.f32 %v628, -48.02
        %v693 = vmul.f32 %v629, -48.02
        %v694 = vmul.f32 %v630, -48.02
        %v695 = vmul.f32 %v631, -48.02
        %v696 = vmul.f32 %v632, -48.02
        %v697 = vmul.f32 %v633, -48.02
        %v698 = vmul.f32 %v634, -48.02
        %v699 = vmul.f32 %v635, -48.02
        %v700 = vmul.f32 %v636, -48.02
        %v701 = vmul.f32 %v637, -48.02
        %v702 = vmul.f32 %v638, -48.02
        %v703 = vmul.f32 %v639, -48.02
        %v704 = vmul.f32 %v640, -48.02
        %v705 = vmul.f32 %v641, -48.02
        %v706 = vmul.f32 %v642, -48.02
        %v707 = vmul.f32 %v643, -48.02
        %v708 = vmul.f32 %v644, -48.02
        %v709 = vmul.f32 %v645, -48.02
        %v710 = vmul.f32 %v646, -48.02
        %v711 = vmul.f32 %v647, -48.02
        %v712 = vmul.f32 %v648, -48.02
        %v713 = vmul.f32 %v649, -48.02
        %v714 = vmul.f32 %v650, -48.02
        %v715 = vmul.f32 %v651, -48.02
        %v716 = vmul.f32 %v652, -48.02
        %v717 = vmul.f32 %v653, -48.02
        %v718 = vmul.f32 %v654, -48.02
        %v719 = vmul.f32 %v655, -48.02
        %v720 = vmul.f32 %v656, -48.02
        %v721 = vmul.f32 %v657, -48.02
        %v722 = vmul.f32 %v658, -48.02
        %v723 = vmul.f32 %v659, -48.02
        %v724 = vmul.f32 %v660, -48.02
        %v725 = vmul.f32 %v661, 1.442695
        %v726 = vpow.pop %v725
        %v727 = vmul.f32 %v662, 1.442695
        %v728 = vpow.pop %v727
        %v729 = vmul.f32 %v663, 1.442695
        %v730 = vpow.pop %v729
        %v731 = vmul.f32 %v664, 1.442695
        %v732 = vpow.pop %v731
        %v733 = vmul.f32 %v665, 1.442695
        %v734 = vpow.pop %v733
        %v735 = vmul.f32 %v666, 1.442695
        %v736 = vpow.pop %v735
        %v737 = vmul.f32 %v667, 1.442695
        %v738 = vpow.pop %v737
        %v739 = vmul.f32 %v668, 1.442695
        %v740 = vpow.pop %v739
        %v741 = vmul.f32 %v669, 1.442695
        %v742 = vpow.pop %v741
        %v743 = vmul.f32 %v670, 1.442695
        %v744 = vpow.pop %v743
        %v745 = vmul.f32 %v671, 1.442695
        %v746 = vpow.pop %v745
        %v747 = vmul.f32 %v672, 1.442695
        %v748 = vpow.pop %v747
        %v749 = vmul.f32 %v673, 1.442695
        %v750 = vpow.pop %v749
        %v751 = vmul.f32 %v674, 1.442695
        %v752 = vpow.pop %v751
        %v753 = vmul.f32 %v675, 1.442695
        %v754 = vpow.pop %v753
        %v755 = vmul.f32 %v676, 1.442695
        %v756 = vpow.pop %v755
        %v757 = vmul.f32 %v677, 1.442695
        %v758 = vpow.pop %v757
        %v759 = vmul.f32 %v678, 1.442695
        %v760 = vpow.pop %v759
        %v761 = vmul.f32 %v679, 1.442695
        %v762 = vpow.pop %v761
        %v763 = vmul.f32 %v680, 1.442695
        %v764 = vpow.pop %v763
        %v765 = vmul.f32 %v681, 1.442695
        %v766 = vpow.pop %v765
        %v767 = vmul.f32 %v682, 1.442695
        %v768 = vpow.pop %v767
        %v769 = vmul.f32 %v683, 1.442695
        %v770 = vpow.pop %v769
        %v771 = vmul.f32 %v684, 1.442695
        %v772 = vpow.pop %v771
        %v773 = vmul.f32 %v685, 1.442695
        %v774 = vpow.pop %v773
        %v775 = vmul.f32 %v686, 1.442695
        %v776 = vpow.pop %v775
        %v777 = vmul.f32 %v687, 1.442695
        %v778 = vpow.pop %v777
        %v779 = vmul.f32 %v688, 1.442695
        %v780 = vpow.pop %v779
        %v781 = vmul.f32 %v689, 1.442695
        %v782 = vpow.pop %v781
        %v783 = vmul.f32 %v690, 1.442695
        %v784 = vpow.pop %v783
        %v785 = vmul.f32 %v691, 1.442695
        %v786 = vpow.pop %v785
        %v787 = vmul.f32 %v692, 1.442695
        %v788 = vpow.pop %v787
        %v789 = vmul.f32 %v693, 1.442695
        %v790 = vpow.pop %v789
        %v791 = vmul.f32 %v694, 1.442695
        %v792 = vpow.pop %v791
        %v793 = vmul.f32 %v695, 1.442695
        %v794 = vpow.pop %v793
        %v795 = vmul.f32 %v696, 1.442695
        %v796 = vpow.pop %v795
        %v797 = vmul.f32 %v697, 1.442695
        %v798 = vpow.pop %v797
        %v799 = vmul.f32 %v698, 1.442695
        %v800 = vpow.pop %v799
        %v801 = vmul.f32 %v699, 1.442695
        %v802 = vpow.pop %v801
        %v803 = vmul.f32 %v700, 1.442695
        %v804 = vpow.pop %v803
        %v805 = vmul.f32 %v701, 1.442695
        %v806 = vpow.pop %v805
        %v807 = vmul.f32 %v702, 1.442695
        %v808 = vpow.pop %v807
        %v809 = vmul.f32 %v703, 1.442695
        %v810 = vpow.pop %v809
        %v811 = vmul.f32 %v704, 1.442695
        %v812 = vpow.pop %v811
        %v813 = vmul.f32 %v705, 1.442695
        %v814 = vpow.pop %v813
        %v815 = vmul.f32 %v706, 1.442695
        %v816 = vpow.pop %v815
        %v817 = vmul.f32 %v707, 1.442695
        %v818 = vpow.pop %v817
        %v819 = vmul.f32 %v708, 1.442695
        %v820 = vpow.pop %v819
        %v821 = vmul.f32 %v709, 1.442695
        %v822 = vpow.pop %v821
        %v823 = vmul.f32 %v710, 1.442695
        %v824 = vpow.pop %v823
        %v825 = vmul.f32 %v711, 1.442695
        %v826 = vpow.pop %v825
        %v827 = vmul.f32 %v712, 1.442695
        %v828 = vpow.pop %v827
        %v829 = vmul.f32 %v713, 1.442695
        %v830 = vpow.pop %v829
        %v831 = vmul.f32 %v714, 1.442695
        %v832 = vpow.pop %v831
        %v833 = vmul.f32 %v715, 1.442695
        %v834 = vpow.pop %v833
        %v835 = vmul.f32 %v716, 1.442695
        %v836 = vpow.pop %v835
        %v837 = vmul.f32 %v717, 1.442695
        %v838 = vpow.pop %v837
        %v839 = vmul.f32 %v718, 1.442695
        %v840 = vpow.pop %v839
        %v841 = vmul.f32 %v719, 1.442695
        %v842 = vpow.pop %v841
        %v843 = vmul.f32 %v720, 1.442695
        %v844 = vpow.pop %v843
        %v845 = vmul.f32 %v721, 1.442695
        %v846 = vpow.pop %v845
        %v847 = vmul.f32 %v722, 1.442695
        %v848 = vpow.pop %v847
        %v849 = vmul.f32 %v723, 1.442695
        %v850 = vpow.pop %v849
        %v851 = vmul.f32 %v724, 1.442695
        %v852 = vpow.pop %v851
        %853 = vst [vmem:[%s137] sm:$0xff] %v726
        %854 = vst [vmem:[%s137 + $0x8] sm:$0xff] %v728
        %855 = vst [vmem:[%s137 + $0x10] sm:$0xff] %v730
        %856 = vst [vmem:[%s137 + $0x18] sm:$0xff] %v732
        %857 = vst [vmem:[%s137 + $0x20] sm:$0xff] %v734
        %858 = vst [vmem:[%s137 + $0x28] sm:$0xff] %v736
        %859 = vst [vmem:[%s137 + $0x30] sm:$0xff] %v738
        %860 = vst [vmem:[%s137 + $0x38] sm:$0xff] %v740
        %861 = vst [vmem:[%s137 + $0x40] sm:$0xff] %v742
        %862 = vst [vmem:[%s137 + $0x48] sm:$0xff] %v744
        %863 = vst [vmem:[%s137 + $0x50] sm:$0xff] %v746
        %864 = vst [vmem:[%s137 + $0x58] sm:$0xff] %v748
        %865 = vst [vmem:[%s137 + $0x60] sm:$0xff] %v750
        %866 = vst [vmem:[%s137 + $0x68] sm:$0xff] %v752
        %867 = vst [vmem:[%s137 + $0x70] sm:$0xff] %v754
        %868 = vst [vmem:[%s137 + $0x78] sm:$0xff] %v756
        %869 = vst [vmem:[%s137 + $0x80] sm:$0xff] %v758
        %870 = vst [vmem:[%s137 + $0x88] sm:$0xff] %v760
        %871 = vst [vmem:[%s137 + $0x90] sm:$0xff] %v762
        %872 = vst [vmem:[%s137 + $0x98] sm:$0xff] %v764
        %873 = vst [vmem:[%s137 + $0xa0] sm:$0xff] %v766
        %874 = vst [vmem:[%s137 + $0xa8] sm:$0xff] %v768
        %875 = vst [vmem:[%s137 + $0xb0] sm:$0xff] %v770
        %876 = vst [vmem:[%s137 + $0xb8] sm:$0xff] %v772
        %877 = vst [vmem:[%s137 + $0xc0] sm:$0xff] %v774
        %878 = vst [vmem:[%s137 + $0xc8] sm:$0xff] %v776
        %879 = vst [vmem:[%s137 + $0xd0] sm:$0xff] %v778
        %880 = vst [vmem:[%s137 + $0xd8] sm:$0xff] %v780
        %881 = vst [vmem:[%s137 + $0xe0] sm:$0xff] %v782
        %882 = vst [vmem:[%s137 + $0xe8] sm:$0xff] %v784
        %883 = vst [vmem:[%s137 + $0xf0] sm:$0xff] %v786
        %884 = vst [vmem:[%s137 + $0xf8] sm:$0xff] %v788
        %885 = vst [vmem:[%s137 + $0x100] sm:$0xff] %v790
        %886 = vst [vmem:[%s137 + $0x108] sm:$0xff] %v792
        %887 = vst [vmem:[%s137 + $0x110] sm:$0xff] %v794
        %888 = vst [vmem:[%s137 + $0x118] sm:$0xff] %v796
        %889 = vst [vmem:[%s137 + $0x120] sm:$0xff] %v798
        %890 = vst [vmem:[%s137 + $0x128] sm:$0xff] %v800
        %891 = vst [vmem:[%s137 + $0x130] sm:$0xff] %v802
        %892 = vst [vmem:[%s137 + $0x138] sm:$0xff] %v804
        %893 = vst [vmem:[%s137 + $0x140] sm:$0xff] %v806
        %894 = vst [vmem:[%s137 + $0x148] sm:$0xff] %v808
        %895 = vst [vmem:[%s137 + $0x150] sm:$0xff] %v810
        %896 = vst [vmem:[%s137 + $0x158] sm:$0xff] %v812
        %897 = vst [vmem:[%s137 + $0x160] sm:$0xff] %v814
        %898 = vst [vmem:[%s137 + $0x168] sm:$0xff] %v816
        %899 = vst [vmem:[%s137 + $0x170] sm:$0xff] %v818
        %900 = vst [vmem:[%s137 + $0x178] sm:$0xff] %v820
        %901 = vst [vmem:[%s137 + $0x180] sm:$0xff] %v822
        %902 = vst [vmem:[%s137 + $0x188] sm:$0xff] %v824
        %903 = vst [vmem:[%s137 + $0x190] sm:$0xff] %v826
        %904 = vst [vmem:[%s137 + $0x198] sm:$0xff] %v828
        %905 = vst [vmem:[%s137 + $0x1a0] sm:$0xff] %v830
        %906 = vst [vmem:[%s137 + $0x1a8] sm:$0xff] %v832
        %907 = vst [vmem:[%s137 + $0x1b0] sm:$0xff] %v834
        %908 = vst [vmem:[%s137 + $0x1b8] sm:$0xff] %v836
        %909 = vst [vmem:[%s137 + $0x1c0] sm:$0xff] %v838
        %910 = vst [vmem:[%s137 + $0x1c8] sm:$0xff] %v840
        %911 = vst [vmem:[%s137 + $0x1d0] sm:$0xff] %v842
        %912 = vst [vmem:[%s137 + $0x1d8] sm:$0xff] %v844
        %913 = vst [vmem:[%s137 + $0x1e0] sm:$0xff] %v846
        %914 = vst [vmem:[%s137 + $0x1e8] sm:$0xff] %v848
        %915 = vst [vmem:[%s137 + $0x1f0] sm:$0xff] %v850
        %916 = vst [vmem:[%s137 + $0x1f8] sm:$0xff] %v852
        %s917 = sand.u32 %s71, 1
        %s918 = scalar_lea.sflag [#allocation3], %s917
        %s919 = sand.u32 %s71, 1
        %s920 = smul.addr %s919, 512
        %s921 = scalar_lea.vmem [#allocation2], %s920
        // Predicated region
        $region29: #{tpu_custom_call.1} parent=27 // pred_check
          %p922 = pneg %p81
        $region30: #{tpu_custom_call.1} parent=27 // pred_check_branch
          %924 = sbr.rel (%p922) target = $region32
        $region31: #{tpu_custom_call.1} parent=27 // pred_region
          %s925 = smul.u32 64, %s16
          %927 = vsyncadd %s918, 0
          %s928 = smul.addr %s925, 8
          %s929 = scalar_lea.hbm %s2, %s928
          %s930 = sshll.u32 %s921, 4
          %s931 = int_to_ptr.vmem [resolvable:$true] %s930
          %s932 = sshll.u32 %s929, 4
          %s933 = int_to_ptr.hbm [resolvable:$true] %s932
          %938 = dma.vmem_to_hbm [thread:$0]  %s931, 8192, %s933, %s918, 128, 128, 8
        $region32: #{tpu_custom_call.1} parent=27 // pred_fallthru
          _
      $region28: #{tpu_custom_call.1} parent=5 // pred_fallthru
        _
      %p939 = scmp.le.s32.totalorder 2, %s11
      // Predicated region
      $region33: #{tpu_custom_call.1} parent=5 // pred_check
        %p940 = pneg %p939
      $region34: #{tpu_custom_call.1} parent=5 // pred_check_branch
        %942 = sbr.rel (%p940) target = $region36
      $region35: #{tpu_custom_call.1} parent=5 // pred_region
        %s943 = ssub.s32 %s11, 2
        // Predicated region
        $region37: #{tpu_custom_call.1} parent=35 // pred_check
          %p944 = pneg %p87
        $region38: #{tpu_custom_call.1} parent=35 // pred_check_branch
          %946 = sbr.rel (%p944) target = $region40
        $region39: #{tpu_custom_call.1} parent=35 // pred_region
          %s947 = sand.u32 %s72, 1
          %s948 = scalar_lea.sflag [#allocation3], %s947
          %s949 = sand.u32 %s72, 1
          %s950 = smul.addr %s949, 512
          %s951 = scalar_lea.vmem [#allocation2], %s950
          %953 = dma.done %s948, 8192
        $region40: #{tpu_custom_call.1} parent=35 // pred_fallthru
          _
      $region36: #{tpu_custom_call.1} parent=5 // pred_fallthru
        _
    $region6: #{tpu_custom_call.1} parent=1 // loop_footer
      %s15 = sadd.s32 1, %s11
    $region7: #{tpu_custom_call.1} parent=1 // loop_footer_branch
      %10 = sbr.rel target = $region3
    $region8: #{tpu_custom_call.1} parent=1 // loop_exit
      _
    %954 = vsyncpa [#allocation3], 1
    %s955 = scalar_lea.sflag [#allocation3], 1
    %956 = vsyncpa %s955, 1

</llo_original>
